<compile_context>
chip_gen: v7x
topology: tpu7x:2x2x1
jax: 0.10.0
libtpu: 0.0.40
codegen_flags: <defaults>
</compile_context>

<pallas_src>
import jax
import jax.numpy as jnp
from jax.experimental import pallas as pl
from jax.experimental.pallas import tpu as pltpu


def _vmem_capacity_bytes():
    """Per-core VMEM capacity; conservative v7x default if the query fails."""
    try:
        info = pltpu.get_tpu_info()
        cap = getattr(info, "vmem_capacity_bytes", None)
        if cap:
            return int(cap)
    except Exception:
        pass
    return 64 * 1024 * 1024


def _attention_kernel(x_ref, w1_ref, b1_ref, w2t_ref, b2_ref,
                      attended_ref, weights_ref):
    """One batch tile: gate = sigmoid(relu(x @ W1 + b1) . w2 + b2); out = x * gate."""
    x = x_ref[...]                                                  # (TB, D)

    # ---- Linear(D -> H) + ReLU: MXU matmul, f32 accumulate. ----
    h = jnp.dot(x, w1_ref[...], preferred_element_type=jnp.float32)
    h = jnp.maximum(h + b1_ref[...].astype(jnp.float32), 0.0)       # (TB, H) f32

    # ---- Linear(H -> 1): VPU multiply + XLU reduce instead of an N=1 MXU pass. ----
    s = jnp.sum(h * w2t_ref[...].astype(jnp.float32), axis=-1, keepdims=True)
    s = s + b2_ref[0, 0]                                            # scalar bias (SMEM)
    gate = jax.nn.sigmoid(s)                                        # (TB, 1) f32, exp on EUP

    weights_ref[...] = gate.astype(weights_ref.dtype)

    if x_ref.dtype == jnp.float32:
        attended = x * gate                                          # f32 path (exact)
    else:
        attended = x * gate.astype(x.dtype)                          # bf16 VPU multiply
    attended_ref[...] = attended.astype(attended_ref.dtype)


def _choose_tile_b(B, D, stream_itemsize, stream_budget_bytes):
    """Largest batch tile that divides B, is sublane-aligned (multiple of 8),
    keeps the double-buffered x/attended stream under the VMEM budget, and
    leaves >= 2 grid steps for pipelining."""
    if B <= 8:
        return B                                     # full-array block (legal for tiny B)
    per_row_bytes = 4 * D * stream_itemsize          # 2 buffers each for x and attended
    cap = min(B // 2, max(stream_budget_bytes // per_row_bytes, 8))
    cap -= cap % 8
    cap = max(cap, 8)
    best = None
    for t in range(8, cap + 1, 8):
        if B % t == 0:
            best = t
    if best is not None:
        return best
    return 8 if B % 8 == 0 else B                    # fallback: tiny tile or full batch


def attention_layer(x, w1, b1, w2, b2, *, tile_b=None, stream_dtype=None):
    """Pallas implementation of AttentionLayer.forward.

    x: (B, D); w1: (D, H); b1: (H,); w2: (H, 1); b2: (1,)
    stream_dtype: optional dtype for the HBM-facing x / W1 / attended stream
      (e.g. jnp.bfloat16 to halve HBM bytes on this memory-bound kernel).
    Returns (attended (B, D), attention_weights (B, 1)).
    """
    B, D = x.shape
    H = w1.shape[1]

    if stream_dtype is None:
        stream_dtype = x.dtype
    stream_dtype = jnp.dtype(stream_dtype)
    stream_isz = stream_dtype.itemsize

    x_s = x.astype(stream_dtype)
    w1_s = w1.astype(stream_dtype)                   # native MXU pass matching x dtype
    b1_2d = b1.reshape(1, H).astype(jnp.float32)
    w2t = w2.reshape(1, H).astype(jnp.float32)       # transpose of the (H, 1) column
    b2_2d = b2.reshape(1, 1).astype(jnp.float32)

    # ---- Generation-aware VMEM budgeting (v7x: 64 MiB/core; v5e/v6e: 128 MiB). ----
    vmem_cap = _vmem_capacity_bytes()
    vmem_limit = min((vmem_cap * 3) // 4, 100 * 1024 * 1024)
    resident_bytes = (2 * D * H * w1_s.dtype.itemsize      # W1 (+ compiler's 2nd copy)
                      + 2 * 2 * H * 4                      # b1 + w2^T (f32), 2 copies
                      + 4 * 1024)                          # misc slack
    headroom = 4 * 1024 * 1024
    assert resident_bytes + headroom < vmem_limit, (
        "W1 does not fit resident in VMEM for this generation; "
        "needs a contraction-axis (D) tiled fallback (not implemented).")
    stream_budget = vmem_limit - resident_bytes - headroom

    if tile_b is None:
        tile_b = _choose_tile_b(B, D, stream_isz, stream_budget)
    # TODO(synk): no ragged-batch handling; B must be divisible by the tile.
    assert B % tile_b == 0, "batch must be divisible by tile_b"
    assert tile_b == B or tile_b % 8 == 0, "tile_b must be a multiple of 8 or == B"

    grid = (B // tile_b,)

    out_isz = stream_isz
    cost = pl.CostEstimate(
        flops=2 * B * D * H + 4 * B * H + 2 * B * D,
        transcendentals=B,                                   # one sigmoid per row
        bytes_accessed=(2 * B * D * stream_isz               # x read + attended write
                        + B * out_isz                        # weights write
                        + D * H * stream_isz + 4 * H + 4),   # resident params
    )

    attended, weights = pl.pallas_call(
        _attention_kernel,
        out_shape=(
            jax.ShapeDtypeStruct((B, D), stream_dtype),
            jax.ShapeDtypeStruct((B, 1), stream_dtype),
        ),
        grid_spec=pltpu.PrefetchScalarGridSpec(
            num_scalar_prefetch=0,
            grid=grid,
            in_specs=[
                pl.BlockSpec((tile_b, D), lambda i: (i, 0)),        # x: streamed tiles
                pl.BlockSpec((D, H), lambda i: (0, 0)),             # W1: resident
                pl.BlockSpec((1, H), lambda i: (0, 0)),             # b1: resident
                pl.BlockSpec((1, H), lambda i: (0, 0)),             # w2^T: resident
                pl.BlockSpec(memory_space=pltpu.MemorySpace.SMEM),  # b2: scalar in SMEM
            ],
            out_specs=[
                pl.BlockSpec((tile_b, D), lambda i: (i, 0)),        # attended
                pl.BlockSpec((tile_b, 1), lambda i: (i, 0)),        # attention weights
            ],
        ),
        compiler_params=pltpu.CompilerParams(
            dimension_semantics=("parallel",),
            vmem_limit_bytes=vmem_limit,
        ),
        cost_estimate=cost,
    )(x_s, w1_s, b1_2d, w2t, b2_2d)
    return attended, weights


def _reference(x, w1, b1, w2, b2):
    h = jnp.maximum(x @ w1 + b1, 0.0)
    w = jax.nn.sigmoid(h @ w2 + b2)
    return x * w, w


if __name__ == "__main__":
    key = jax.random.PRNGKey(0)
    # Small but lane-dense shapes: batch=64, input_dim=128 -> hidden=64.
    B, D = 64, 128
    H = D // 2

    k_x, k_w1, k_b1, k_w2, k_b2 = jax.random.split(key, 5)
    x = jax.random.normal(k_x, (B, D), dtype=jnp.float32)
    # Deterministic synthetic parameters (shapes match nn.Linear(D, D//2), nn.Linear(D//2, 1)).
    w1 = jax.random.normal(k_w1, (D, H), dtype=jnp.float32) * (1.0 / jnp.sqrt(D))
    b1 = jax.random.normal(k_b1, (H,), dtype=jnp.float32) * 0.1
    w2 = jax.random.normal(k_w2, (H, 1), dtype=jnp.float32) * (1.0 / jnp.sqrt(H))
    b2 = jax.random.normal(k_b2, (1,), dtype=jnp.float32) * 0.1

    ref_att, ref_w = _reference(x, w1, b1, w2, b2)

    # ---- Exact f32 path (matches the PyTorch module semantics). ----
    attended, weights = attention_layer(x, w1, b1, w2, b2)
    jax.block_until_ready((attended, weights))
    assert attended.shape == (B, D) and weights.shape == (B, 1)
    assert jnp.allclose(attended, ref_att, atol=1e-5, rtol=1e-5)
    assert jnp.allclose(weights, ref_w, atol=1e-5, rtol=1e-5)

    # ---- bf16-streaming path (memory-bound fast path; loose tolerance). ----
    att_bf, w_bf = attention_layer(x, w1, b1, w2, b2, stream_dtype=jnp.bfloat16)
    jax.block_until_ready((att_bf, w_bf))
    assert att_bf.dtype == jnp.bfloat16 and w_bf.dtype == jnp.bfloat16
    assert jnp.allclose(att_bf.astype(jnp.float32), ref_att, atol=5e-2, rtol=5e-2)
    assert jnp.allclose(w_bf.astype(jnp.float32), ref_w, atol=5e-2, rtol=5e-2)

    print("KERNEL_OK")
</pallas_src>

<mosaic_0001>
module attributes {stable_mosaic.version = 11 : i64} {
  func.func @_attention_kernel(%arg0: i32, %arg1: memref<32x128xf32, #tpu.memory_space<vmem>>, %arg2: memref<128x64xf32, #tpu.memory_space<vmem>>, %arg3: memref<1x64xf32, #tpu.memory_space<vmem>>, %arg4: memref<1x64xf32, #tpu.memory_space<vmem>>, %arg5: memref<1x1xf32, #tpu.memory_space<smem>>, %arg6: memref<32x128xf32, #tpu.memory_space<vmem>>, %arg7: memref<32x1xf32, #tpu.memory_space<vmem>>) attributes {dimension_semantics = [#tpu.dimension_semantics<parallel>], iteration_bounds = array<i64: 2>, scalar_prefetch = 0 : i64, scratch_operands = 0 : i64, tpu.core_type = #tpu.core_type<tc>, window_params = [{transform_indices = @transform_0, window_bounds = array<i64: 32, 128>}, {pipeline_mode = #tpu.pipeline_mode<synchronous>, transform_indices = @transform_1, window_bounds = array<i64: 128, 64>}, {pipeline_mode = #tpu.pipeline_mode<synchronous>, transform_indices = @transform_2, window_bounds = array<i64: 1, 64>}, {pipeline_mode = #tpu.pipeline_mode<synchronous>, transform_indices = @transform_3, window_bounds = array<i64: 1, 64>}, {transform_indices = @transform_4, window_bounds = array<i64: 1, 1>}, {transform_indices = @transform_5, window_bounds = array<i64: 32, 128>}, {transform_indices = @transform_6, window_bounds = array<i64: 32, 1>}]} {
    %c0 = arith.constant 0 : index
    %c0_0 = arith.constant 0 : index
    %0 = vector.load %arg1[%c0, %c0_0] : memref<32x128xf32, #tpu.memory_space<vmem>>, vector<32x128xf32>
    %c0_1 = arith.constant 0 : index
    %c0_2 = arith.constant 0 : index
    %1 = vector.load %arg2[%c0_1, %c0_2] : memref<128x64xf32, #tpu.memory_space<vmem>>, vector<128x64xf32>
    %cst = arith.constant dense<0.000000e+00> : vector<32x64xf32>
    %2 = tpu.matmul %0, %1, %cst {dimension_numbers = #tpu.dot_dimension_numbers<[1], [0], [0], [1], [0, 0, 1, 1], [], []>} : vector<32x128xf32>, vector<128x64xf32>, vector<32x64xf32> -> vector<32x64xf32>
    %c0_3 = arith.constant 0 : index
    %c0_4 = arith.constant 0 : index
    %3 = vector.load %arg3[%c0_3, %c0_4] : memref<1x64xf32, #tpu.memory_space<vmem>>, vector<1x64xf32>
    %4 = vector.broadcast %3 : vector<1x64xf32> to vector<32x64xf32>
    %5 = arith.addf %2, %4 : vector<32x64xf32>
    %cst_5 = arith.constant 0.000000e+00 : f32
    %6 = vector.broadcast %cst_5 : f32 to vector<32x64xf32>
    %7 = arith.maximumf %5, %6 : vector<32x64xf32>
    %c0_6 = arith.constant 0 : index
    %c0_7 = arith.constant 0 : index
    %8 = vector.load %arg4[%c0_6, %c0_7] : memref<1x64xf32, #tpu.memory_space<vmem>>, vector<1x64xf32>
    %9 = vector.broadcast %8 : vector<1x64xf32> to vector<32x64xf32>
    %10 = arith.mulf %7, %9 : vector<32x64xf32>
    %cst_8 = arith.constant dense<0.000000e+00> : vector<32xf32>
    %11 = vector.multi_reduction <add>, %10, %cst_8 [1] : vector<32x64xf32> to vector<32xf32>
    %12 = vector.shape_cast %11 : vector<32xf32> to vector<32x1xf32>
    %c0_9 = arith.constant 0 : index
    %c0_10 = arith.constant 0 : index
    %13 = memref.load %arg5[%c0_9, %c0_10] : memref<1x1xf32, #tpu.memory_space<smem>>
    %14 = vector.broadcast %13 : f32 to vector<32x1xf32>
    %15 = arith.addf %12, %14 : vector<32x1xf32>
    %16 = arith.negf %15 : vector<32x1xf32>
    %17 = math.exp %16 : vector<32x1xf32>
    %cst_11 = arith.constant 1.000000e+00 : f32
    %18 = vector.broadcast %cst_11 : f32 to vector<32x1xf32>
    %19 = arith.addf %18, %17 : vector<32x1xf32>
    %20 = arith.divf %18, %19 : vector<32x1xf32>
    %c0_12 = arith.constant 0 : index
    %c0_13 = arith.constant 0 : index
    %21 = vector.load %arg7[%c0_12, %c0_13] : memref<32x1xf32, #tpu.memory_space<vmem>>, vector<32x1xf32>
    tpu.vector_store %arg7[%c0_12, %c0_13], %20 {strides = array<i32>} : memref<32x1xf32, #tpu.memory_space<vmem>>, vector<32x1xf32>,
    %22 = vector.broadcast %20 : vector<32x1xf32> to vector<32x128xf32>
    %23 = arith.mulf %0, %22 : vector<32x128xf32>
    %c0_14 = arith.constant 0 : index
    %c0_15 = arith.constant 0 : index
    %24 = vector.load %arg6[%c0_14, %c0_15] : memref<32x128xf32, #tpu.memory_space<vmem>>, vector<32x128xf32>
    tpu.vector_store %arg6[%c0_14, %c0_15], %23 {strides = array<i32>} : memref<32x128xf32, #tpu.memory_space<vmem>>, vector<32x128xf32>,
    return
  }
  func.func @transform_0(%arg0: i32) -> (i32, i32) {
    %c0_i32 = arith.constant 0 : i32
    %c0_i32_0 = arith.constant 0 : i32
    return %arg0, %c0_i32 : i32, i32
  }
  func.func @transform_1(%arg0: i32) -> (i32, i32) {
    %c0_i32 = arith.constant 0 : i32
    %c0_i32_0 = arith.constant 0 : i32
    %c0_i32_1 = arith.constant 0 : i32
    return %c0_i32, %c0_i32_0 : i32, i32
  }
  func.func @transform_2(%arg0: i32) -> (i32, i32) {
    %c0_i32 = arith.constant 0 : i32
    %c0_i32_0 = arith.constant 0 : i32
    %c0_i32_1 = arith.constant 0 : i32
    return %c0_i32, %c0_i32_0 : i32, i32
  }
  func.func @transform_3(%arg0: i32) -> (i32, i32) {
    %c0_i32 = arith.constant 0 : i32
    %c0_i32_0 = arith.constant 0 : i32
    %c0_i32_1 = arith.constant 0 : i32
    return %c0_i32, %c0_i32_0 : i32, i32
  }
  func.func @transform_4(%arg0: i32) -> (i32, i32) {
    %c0_i32 = arith.constant 0 : i32
    %c0_i32_0 = arith.constant 0 : i32
    %c0_i32_1 = arith.constant 0 : i32
    return %c0_i32, %c0_i32_0 : i32, i32
  }
  func.func @transform_5(%arg0: i32) -> (i32, i32) {
    %c0_i32 = arith.constant 0 : i32
    %c0_i32_0 = arith.constant 0 : i32
    return %arg0, %c0_i32 : i32, i32
  }
  func.func @transform_6(%arg0: i32) -> (i32, i32) {
    %c0_i32 = arith.constant 0 : i32
    %c0_i32_0 = arith.constant 0 : i32
    return %arg0, %c0_i32 : i32, i32
  }
}

</mosaic_0001>

<llo_original>
// kernel: tpu_custom_call.1
$region0: #{tpu_custom_call.1}
  #allocation0 [shape = 'u32[]', space=smem, size = 0x4, offset = 0x4, fixed_abs, tag = 'smem constant byte address 0x4 - core index']
  #allocation1 [shape = 'u32[144,128]{1,0:T(1,128)}', space=vmem, size = 0x12000, scoped, tag = 'internal scratch']
  #allocation2 [shape = 'f32[1,1]{1,0:T(1,128)S(6)}', space=smem, size = 0x200, scoped, tag = 'scoped memory for tpu_custom_call.1']
  %s0 = inlined_call_operand.vmem [shape: f32[64,128], index: 0, kind: input, shape index: {}]
  %s1 = inlined_call_operand.vmem [shape: f32[128,64], index: 1, kind: input, shape index: {}]
  %s2 = inlined_call_operand.vmem [shape: f32[1,64], index: 2, kind: input, shape index: {}]
  %s3 = inlined_call_operand.vmem [shape: f32[1,64], index: 3, kind: input, shape index: {}]
  %s4 = inlined_call_operand.<no memory space> [shape: f32[1,1], index: 4, kind: input, shape index: {}]
  %s5 = inlined_call_operand.hbm [shape: f32[64,128], index: 5, kind: output, shape index: {0}]
  %s6 = inlined_call_operand.vmem [shape: f32[64,1], index: 6, kind: output, shape index: {1}]
  %7 = xla_tuple %s5, %s6
  %s8 = sld [smem:[#allocation0]]
  $region61: #{tpu_custom_call.1} parent=0
    _
  %s10 = ssub.s32 1, %s8
  %s11 = scalar_select 0, %s10, %s8
  %12 = sst [smem:[#allocation2]] %s4
  $region1: #{tpu_custom_call.1} parent=0
    #allocation3 [shape = 'u8[32768]{0}', space=vmem, size = 0x8000, scoped, tag = 'output window, operand 0']
    #allocation4 [shape = 's32[2]{0}', space=sflag, size = 0x8, scoped, tag = 'scoped memory for tpu_custom_call.1']
    %13 = vsyncpa [#allocation4], 0
    %s14 = scalar_lea.sflag [#allocation4], 1
    %15 = vsyncpa %s14, 0
    loop: start=0, step=1, limit=4
    $region2: #{tpu_custom_call.1} parent=1 // loop_pre_header
      _
    $region3: #{tpu_custom_call.1} parent=1 // loop_header
      %s17 = sphi 0, %s21
      %p18 = scmp.ge.s32.totalorder %s17, 4
      %s27 = sphi 0, %s29
      %s30 = sphi 0, %s27
      %s31 = sphi 0, %s30
      %s47 = sphi 0, %s31
      %s51 = sphi 0, %s51
      %s53 = sphi 0, %s51
      %s54 = sphi 0, %s53
      %s68 = sphi 0, %s54
      %s72 = sphi 0, %s72
      %s74 = sphi 0, %s72
      %s75 = sphi 0, %s74
      %s89 = sphi 0, %s75
      %s93 = sphi 0, %s93
      %s95 = sphi 0, %s93
      %s96 = sphi 0, %s95
      %s110 = sphi 0, %s96
      %s114 = sphi 0, %s114
      %s116 = sphi 0, %s114
      %s117 = sphi 0, %s116
      %s131 = sphi 0, %s117
      %s137 = sphi 0, %s139
      %s140 = sphi 0, %s137
      %s141 = sphi 0, %s140
      %s157 = sphi 0, %s141
      %s163 = sphi 0, %s165
      %s166 = sphi 0, %s163
      %s167 = sphi 0, %s166
      %s183 = sphi 0, %s167
    $region4: #{tpu_custom_call.1} parent=1 // loop_header_branch
      %20 = sbr.rel (%p18) target = $region8
    $region5: #{tpu_custom_call.1} parent=1 // loop_body
      %s22 = ssub.s32 %s17, 1
      %s23 = ssub.s32 %s17, 2
      %s24 = sadd.s32 %s17, 1
      %s25 = ssub.s32 %s17, %s24
      %p26 = scmp.eq.s32.totalorder %s25, 0
      %s28 = sadd.s32 %s27, 1
      %s29 = scalar_select %p26, %s27, %s28
      %p32 = pneg %p26
      %p33 = scmp.eq.s32.totalorder %s17, 1
      %p34 = por %p32, %p33
      %p35 = scmp.ne.s32.totalorder %s27, %s30
      %p36 = scmp.eq.s32.totalorder %s17, 0
      %p37 = por %p35, %p36
      %p38 = scmp.ne.s32.totalorder %s27, %s30
      %p39 = scmp.eq.s32.totalorder %s22, 1
      %p40 = por %p38, %p39
      %p41 = scmp.ne.s32.totalorder %s30, %s31
      %p42 = scmp.eq.s32.totalorder %s22, 0
      %p43 = por %p41, %p42
      %p44 = scmp.ne.s32.totalorder %s30, %s31
      %p45 = scmp.eq.s32.totalorder %s23, 1
      %p46 = por %p44, %p45
      %p48 = scmp.ne.s32.totalorder %s31, %s47
      %p49 = scmp.eq.s32.totalorder %s23, 0
      %p50 = por %p48, %p49
      %s52 = sadd.s32 %s51, 1
      %p55 = scmp.eq.s32.totalorder %s17, 1
      %p56 = scmp.ne.s32.totalorder %s51, %s53
      %p57 = scmp.eq.s32.totalorder %s17, 0
      %p58 = por %p56, %p57
      %p59 = scmp.ne.s32.totalorder %s51, %s53
      %p60 = scmp.eq.s32.totalorder %s22, 1
      %p61 = por %p59, %p60
      %p62 = scmp.ne.s32.totalorder %s53, %s54
      %p63 = scmp.eq.s32.totalorder %s22, 0
      %p64 = por %p62, %p63
      %p65 = scmp.ne.s32.totalorder %s53, %s54
      %p66 = scmp.eq.s32.totalorder %s23, 1
      %p67 = por %p65, %p66
      %p69 = scmp.ne.s32.totalorder %s54, %s68
      %p70 = scmp.eq.s32.totalorder %s23, 0
      %p71 = por %p69, %p70
      %s73 = sadd.s32 %s72, 1
      %p76 = scmp.eq.s32.totalorder %s17, 1
      %p77 = scmp.ne.s32.totalorder %s72, %s74
      %p78 = scmp.eq.s32.totalorder %s17, 0
      %p79 = por %p77, %p78
      %p80 = scmp.ne.s32.totalorder %s72, %s74
      %p81 = scmp.eq.s32.totalorder %s22, 1
      %p82 = por %p80, %p81
      %p83 = scmp.ne.s32.totalorder %s74, %s75
      %p84 = scmp.eq.s32.totalorder %s22, 0
      %p85 = por %p83, %p84
      %p86 = scmp.ne.s32.totalorder %s74, %s75
      %p87 = scmp.eq.s32.totalorder %s23, 1
      %p88 = por %p86, %p87
      %p90 = scmp.ne.s32.totalorder %s75, %s89
      %p91 = scmp.eq.s32.totalorder %s23, 0
      %p92 = por %p90, %p91
      %s94 = sadd.s32 %s93, 1
      %p97 = scmp.eq.s32.totalorder %s17, 1
      %p98 = scmp.ne.s32.totalorder %s93, %s95
      %p99 = scmp.eq.s32.totalorder %s17, 0
      %p100 = por %p98, %p99
      %p101 = scmp.ne.s32.totalorder %s93, %s95
      %p102 = scmp.eq.s32.totalorder %s22, 1
      %p103 = por %p101, %p102
      %p104 = scmp.ne.s32.totalorder %s95, %s96
      %p105 = scmp.eq.s32.totalorder %s22, 0
      %p106 = por %p104, %p105
      %p107 = scmp.ne.s32.totalorder %s95, %s96
      %p108 = scmp.eq.s32.totalorder %s23, 1
      %p109 = por %p107, %p108
      %p111 = scmp.ne.s32.totalorder %s96, %s110
      %p112 = scmp.eq.s32.totalorder %s23, 0
      %p113 = por %p111, %p112
      %s115 = sadd.s32 %s114, 1
      %p118 = scmp.eq.s32.totalorder %s17, 1
      %p119 = scmp.ne.s32.totalorder %s114, %s116
      %p120 = scmp.eq.s32.totalorder %s17, 0
      %p121 = por %p119, %p120
      %p122 = scmp.ne.s32.totalorder %s114, %s116
      %p123 = scmp.eq.s32.totalorder %s22, 1
      %p124 = por %p122, %p123
      %p125 = scmp.ne.s32.totalorder %s116, %s117
      %p126 = scmp.eq.s32.totalorder %s22, 0
      %p127 = por %p125, %p126
      %p128 = scmp.ne.s32.totalorder %s116, %s117
      %p129 = scmp.eq.s32.totalorder %s23, 1
      %p130 = por %p128, %p129
      %p132 = scmp.ne.s32.totalorder %s117, %s131
      %p133 = scmp.eq.s32.totalorder %s23, 0
      %p134 = por %p132, %p133
      %s135 = ssub.s32 %s17, %s24
      %p136 = scmp.eq.s32.totalorder %s135, 0
      %s138 = sadd.s32 %s137, 1
      %s139 = scalar_select %p136, %s137, %s138
      %p142 = pneg %p136
      %p143 = scmp.eq.s32.totalorder %s17, 1
      %p144 = por %p142, %p143
      %p145 = scmp.ne.s32.totalorder %s137, %s140
      %p146 = scmp.eq.s32.totalorder %s17, 0
      %p147 = por %p145, %p146
      %p148 = scmp.ne.s32.totalorder %s137, %s140
      %p149 = scmp.eq.s32.totalorder %s22, 1
      %p150 = por %p148, %p149
      %p151 = scmp.ne.s32.totalorder %s140, %s141
      %p152 = scmp.eq.s32.totalorder %s22, 0
      %p153 = por %p151, %p152
      %p154 = scmp.ne.s32.totalorder %s140, %s141
      %p155 = scmp.eq.s32.totalorder %s23, 1
      %p156 = por %p154, %p155
      %p158 = scmp.ne.s32.totalorder %s141, %s157
      %p159 = scmp.eq.s32.totalorder %s23, 0
      %p160 = por %p158, %p159
      %s161 = ssub.s32 %s17, %s24
      %p162 = scmp.eq.s32.totalorder %s161, 0
      %s164 = sadd.s32 %s163, 1
      %s165 = scalar_select %p162, %s163, %s164
      %p168 = pneg %p162
      %p169 = scmp.eq.s32.totalorder %s17, 1
      %p170 = por %p168, %p169
      %p171 = scmp.ne.s32.totalorder %s163, %s166
      %p172 = scmp.eq.s32.totalorder %s17, 0
      %p173 = por %p171, %p172
      %p174 = scmp.ne.s32.totalorder %s163, %s166
      %p175 = scmp.eq.s32.totalorder %s22, 1
      %p176 = por %p174, %p175
      %p177 = scmp.ne.s32.totalorder %s166, %s167
      %p178 = scmp.eq.s32.totalorder %s22, 0
      %p179 = por %p177, %p178
      %p180 = scmp.ne.s32.totalorder %s166, %s167
      %p181 = scmp.eq.s32.totalorder %s23, 1
      %p182 = por %p180, %p181
      %p184 = scmp.ne.s32.totalorder %s167, %s183
      %p185 = scmp.eq.s32.totalorder %s23, 0
      %p186 = por %p184, %p185
      %p187 = scmp.le.s32.totalorder 1, %s17
      %p188 = scmp.lt.s32.totalorder %s17, 3
      %p189 = pnand %p187, %p188
      %p190 = pneg %p189
      // Predicated region
      $region9: #{tpu_custom_call.1} parent=5 // pred_check
        _
      $region10: #{tpu_custom_call.1} parent=5 // pred_check_branch
        %192 = sbr.rel (%p189) target = $region12
      $region11: #{tpu_custom_call.1} parent=5 // pred_region
        %s193 = ssub.s32 %s17, 1
        // Predicated region
        $region13: #{tpu_custom_call.1} parent=11 // pred_check
          %p194 = pneg %p64
        $region14: #{tpu_custom_call.1} parent=11 // pred_check_branch
          %196 = sbr.rel (%p194) target = $region16
        $region15: #{tpu_custom_call.1} parent=11 // pred_region
          _
        $region16: #{tpu_custom_call.1} parent=11 // pred_fallthru
          _
        // Predicated region
        $region17: #{tpu_custom_call.1} parent=11 // pred_check
          %p197 = pneg %p85
        $region18: #{tpu_custom_call.1} parent=11 // pred_check_branch
          %199 = sbr.rel (%p197) target = $region20
        $region19: #{tpu_custom_call.1} parent=11 // pred_region
          _
        $region20: #{tpu_custom_call.1} parent=11 // pred_fallthru
          _
        // Predicated region
        $region21: #{tpu_custom_call.1} parent=11 // pred_check
          %p200 = pneg %p106
        $region22: #{tpu_custom_call.1} parent=11 // pred_check_branch
          %202 = sbr.rel (%p200) target = $region24
        $region23: #{tpu_custom_call.1} parent=11 // pred_region
          _
        $region24: #{tpu_custom_call.1} parent=11 // pred_fallthru
          _
        // Predicated region
        $region25: #{tpu_custom_call.1} parent=11 // pred_check
          %p203 = pneg %p127
        $region26: #{tpu_custom_call.1} parent=11 // pred_check_branch
          %205 = sbr.rel (%p203) target = $region28
        $region27: #{tpu_custom_call.1} parent=11 // pred_region
          _
        $region28: #{tpu_custom_call.1} parent=11 // pred_fallthru
          _
      $region12: #{tpu_custom_call.1} parent=5 // pred_fallthru
        _
      %p206 = scmp.lt.s32.totalorder %s17, 2
      // Predicated region
      $region29: #{tpu_custom_call.1} parent=5 // pred_check
        %p207 = pneg %p206
      $region30: #{tpu_custom_call.1} parent=5 // pred_check_branch
        %209 = sbr.rel (%p207) target = $region32
      $region31: #{tpu_custom_call.1} parent=5 // pred_region
        // Predicated region
        $region33: #{tpu_custom_call.1} parent=31 // pred_check
          %p210 = pneg %p37
        $region34: #{tpu_custom_call.1} parent=31 // pred_check_branch
          %212 = sbr.rel (%p210) target = $region36
        $region35: #{tpu_custom_call.1} parent=31 // pred_region
          %s213 = smul.u32 4, %s17
          %p214 = scmp.lt.s32.totalorder %s213, 7
          %s215 = scalar_select %p214, %s213, 7
          %s216 = smul.addr %s215, 8
          %s217 = scalar_lea.vmem %s0, %s216
          %s218 = smul.u32 4, %s17
        $region36: #{tpu_custom_call.1} parent=31 // pred_fallthru
          _
      $region32: #{tpu_custom_call.1} parent=5 // pred_fallthru
        _
      %p219 = scmp.le.s32.totalorder 1, %s17
      %p220 = scmp.lt.s32.totalorder %s17, 3
      %p221 = pnand %p219, %p220
      %p222 = pneg %p221
      // Predicated region
      $region37: #{tpu_custom_call.1} parent=5 // pred_check
        _
      $region38: #{tpu_custom_call.1} parent=5 // pred_check_branch
        %224 = sbr.rel (%p221) target = $region40
      $region39: #{tpu_custom_call.1} parent=5 // pred_region
        %s225 = ssub.s32 %s17, 1
        %s226 = smul.u32 4, %s22
        %p227 = scmp.lt.s32.totalorder %s226, 7
        %s228 = scalar_select %p227, %s226, 7
        %s229 = smul.addr %s228, 8
        %s230 = scalar_lea.vmem %s0, %s229
        %p231 = pneg %p43
        %p232 = pneg %p40
        %p233 = pneg %p64
        %p234 = pneg %p61
        %p235 = pneg %p85
        %p236 = pneg %p82
        %p237 = pneg %p106
        %p238 = pneg %p103
        %p239 = pneg %p127
        %p240 = pneg %p124
        %p241 = pneg %p153
        %p242 = pneg %p150
        %s243 = sand.u32 %s140, 1
        %s244 = scalar_lea.sflag [#allocation4], %s243
        %s245 = sand.u32 %s140, 1
        %s246 = smul.addr %s245, 32
        %s247 = scalar_lea.vmem [#allocation3], %s246
        %p248 = pneg %p179
        %p249 = pneg %p176
        %s250 = smul.u32 4, %s22
        %p251 = scmp.lt.s32.totalorder %s250, 7
        %s252 = scalar_select %p251, %s250, 7
        %s253 = smul.addr %s252, 8
        %s254 = scalar_lea.vmem %s6, %s253
        %s255 = smul.u32 4, %s22
        %p256 = scmp.lt.s32.totalorder %s255, 7
        %s257 = scalar_select %p256, %s255, 7
        %s258 = smul.addr %s257, 8
        %s259 = scalar_lea.vmem %s0, %s258
        %s260 = smul.u32 4, %s22
        %s261 = smul.u32 4, %s22
        %s262 = smul.u32 4, %s22
        %p263 = scmp.lt.s32.totalorder %s262, 7
        %s264 = scalar_select %p263, %s262, 7
        %s265 = smul.addr %s264, 8
        %s266 = scalar_lea.vmem %s6, %s265
        %s267 = smul.u32 4, %s22
        %v268 = vld [vmem:[%s259] sm:$0xff]
        %v269 = vld [vmem:[%s259 + $0x8] sm:$0xff]
        %v270 = vld [vmem:[%s259 + $0x10] sm:$0xff]
        %v271 = vld [vmem:[%s259 + $0x18] sm:$0xff]
        %v272 = vld [vmem:[%s1] sm:$0xff]
        %v273 = vld [vmem:[%s1 + $0x8] sm:$0xff]
        %v274 = vld [vmem:[%s1 + $0x10] sm:$0xff]
        %v275 = vld [vmem:[%s1 + $0x18] sm:$0xff]
        %v276 = vld [vmem:[%s1 + $0x20] sm:$0xff]
        %v277 = vld [vmem:[%s1 + $0x28] sm:$0xff]
        %v278 = vld [vmem:[%s1 + $0x30] sm:$0xff]
        %v279 = vld [vmem:[%s1 + $0x38] sm:$0xff]
        %v280 = vld [vmem:[%s1 + $0x40] sm:$0xff]
        %v281 = vld [vmem:[%s1 + $0x48] sm:$0xff]
        %v282 = vld [vmem:[%s1 + $0x50] sm:$0xff]
        %v283 = vld [vmem:[%s1 + $0x58] sm:$0xff]
        %v284 = vld [vmem:[%s1 + $0x60] sm:$0xff]
        %v285 = vld [vmem:[%s1 + $0x68] sm:$0xff]
        %v286 = vld [vmem:[%s1 + $0x70] sm:$0xff]
        %v287 = vld [vmem:[%s1 + $0x78] sm:$0xff]
        %v288 = vld [vmem:[%s2] sm:$0x1]
        %v290 = vlaneseq
        %v291 = vshrl.u32 %v290, 7
        %v292 = vsub.s32 0, %v291
        %v293 = vrot.slane %v288, %v292
        %295 = vmatprep.subr.mxu0 0.0
        %296 = vmatpush1.msra.mxu0 %v272
        %297 = vmatprep.subr.mxu0 0.0
        %298 = vmatpush1.msra.mxu0 %v273
        %299 = vmatprep.subr.mxu0 0.0
        %300 = vmatpush1.msra.mxu0 %v274
        %301 = vmatprep.subr.mxu0 0.0
        %302 = vmatpush1.msra.mxu0 %v275
        %303 = vmatprep.subr.mxu0 0.0
        %304 = vmatpush1.msra.mxu0 %v276
        %305 = vmatprep.subr.mxu0 0.0
        %306 = vmatpush1.msra.mxu0 %v277
        %307 = vmatprep.subr.mxu0 0.0
        %308 = vmatpush1.msra.mxu0 %v278
        %309 = vmatprep.subr.mxu0 0.0
        %310 = vmatpush1.msra.mxu0 %v279
        %311 = vmatprep.subr.mxu0 0.0
        %312 = vmatpush1.msra.mxu0 %v280
        %313 = vmatprep.subr.mxu0 0.0
        %314 = vmatpush1.msra.mxu0 %v281
        %315 = vmatprep.subr.mxu0 0.0
        %316 = vmatpush1.msra.mxu0 %v282
        %317 = vmatprep.subr.mxu0 0.0
        %318 = vmatpush1.msra.mxu0 %v283
        %319 = vmatprep.subr.mxu0 0.0
        %320 = vmatpush1.msra.mxu0 %v284
        %321 = vmatprep.subr.mxu0 0.0
        %322 = vmatpush1.msra.mxu0 %v285
        %323 = vmatprep.subr.mxu0 0.0
        %324 = vmatpush1.msra.mxu0 %v286
        %325 = vmatprep.subr.mxu0 0.0
        %326 = vmatpush1.msra.mxu0 %v287
        %327 = vmatprep.subr.mxu0 0.0
        %328 = vmatpush1.msra.mxu0 0.0
        %329 = vmatprep.subr.mxu0 0.0
        %330 = vmatpush1.msra.mxu0 0.0
        %331 = vmatprep.subr.mxu0 0.0
        %332 = vmatpush1.msra.mxu0 0.0
        %333 = vmatprep.subr.mxu0 0.0
        %334 = vmatpush1.msra.mxu0 0.0
        %335 = vmatprep.subr.mxu0 0.0
        %336 = vmatpush1.msra.mxu0 0.0
        %337 = vmatprep.subr.mxu0 0.0
        %338 = vmatpush1.msra.mxu0 0.0
        %339 = vmatprep.subr.mxu0 0.0
        %340 = vmatpush1.msra.mxu0 0.0
        %341 = vmatprep.subr.mxu0 0.0
        %342 = vmatpush1.msra.mxu0 0.0
        %343 = vmatprep.subr.mxu0 0.0
        %344 = vmatpush1.msra.mxu0 0.0
        %345 = vmatprep.subr.mxu0 0.0
        %346 = vmatpush1.msra.mxu0 0.0
        %347 = vmatprep.subr.mxu0 0.0
        %348 = vmatpush1.msra.mxu0 0.0
        %349 = vmatprep.subr.mxu0 0.0
        %350 = vmatpush1.msra.mxu0 0.0
        %351 = vmatprep.subr.mxu0 0.0
        %352 = vmatpush1.msra.mxu0 0.0
        %353 = vmatprep.subr.mxu0 0.0
        %354 = vmatpush1.msra.mxu0 0.0
        %355 = vmatprep.subr.mxu0 0.0
        %356 = vmatpush1.msra.mxu0 0.0
        %357 = vmatprep.subr.mxu0 0.0
        %358 = vmatpush1.msra.mxu0 0.0
        %359 = vmatprep.mubr.f32.mxu0 0.0
        %360 = vmatmul.mubr.f32.gmra.mrb[0].mxu0 %v268
        %v361 = vpop.f32.mrb[0].mxu0
        %v362 = vadd.f32 %v293, %v361
        %v363 = vpop.f32.mrb[0].mxu0
        %364 = vmatprep.mubr.f32.mxu0 0.0
        %365 = vmatmul.mubr.f32.gmra.mrb[0].mxu0 %v269
        %v366 = vpop.f32.mrb[0].mxu0
        %v367 = vadd.f32 %v293, %v366
        %v368 = vpop.f32.mrb[0].mxu0
        %369 = vmatprep.mubr.f32.mxu0 0.0
        %370 = vmatmul.mubr.f32.gmra.mrb[0].mxu0 %v270
        %v371 = vpop.f32.mrb[0].mxu0
        %v372 = vadd.f32 %v293, %v371
        %v373 = vpop.f32.mrb[0].mxu0
        %374 = vmatprep.mubr.f32.mxu0 0.0
        %375 = vmatmul.mubr.f32.gmra.mrb[0].mxu0 %v271
        %v376 = vpop.f32.mrb[0].mxu0
        %v377 = vadd.f32 %v293, %v376
        %v378 = vpop.f32.mrb[0].mxu0
        %379 = vdwg.mxu0
        %v380 = vmax.f32 %v362, 0.0
        %v381 = vmax.f32 %v367, 0.0
        %v382 = vmax.f32 %v372, 0.0
        %v383 = vmax.f32 %v377, 0.0
        %v384 = vld [vmem:[%s3] sm:$0x1]
        %v386 = vlaneseq
        %v387 = vshrl.u32 %v386, 7
        %v388 = vsub.s32 0, %v387
        %v389 = vrot.slane %v384, %v388
        %v391 = vmul.f32 %v380, %v389
        %v392 = vmul.f32 %v381, %v389
        %v393 = vmul.f32 %v382, %v389
        %v394 = vmul.f32 %v383, %v389
        %vm395 = vcmask 523264
        %v396 = vsel %vm395, %v391, 0.0
        %397 = vadd.xlane.f32.xlu0 %v396
        %v398 = vpop.xlane.xlu0 %397
        %v399 = vsel %vm395, %v392, 0.0
        %400 = vadd.xlane.f32.xlu0 %v399
        %v401 = vpop.xlane.xlu0 %400
        %v402 = vsel %vm395, %v393, 0.0
        %403 = vadd.xlane.f32.xlu0 %v402
        %v404 = vpop.xlane.xlu0 %403
        %v405 = vsel %vm395, %v394, 0.0
        %406 = vadd.xlane.f32.xlu0 %v405
        %v407 = vpop.xlane.xlu0 %406
        %s408 = sld [smem:[#allocation2]]
        %v409 = vstv %s408
        %v410 = vadd.f32 %v398, %v409
        %v411 = vadd.f32 %v401, %v409
        %v412 = vadd.f32 %v404, %v409
        %v413 = vadd.f32 %v407, %v409
        %v414 = vxor.u32 %v410, 2147483648
        %v415 = vxor.u32 %v411, 2147483648
        %v416 = vxor.u32 %v412, 2147483648
        %v417 = vxor.u32 %v413, 2147483648
        %v418 = vmul.f32 %v414, 1.442695
        %v419 = vpow.pop %v418
        %v420 = vmul.f32 %v415, 1.442695
        %v421 = vpow.pop %v420
        %v422 = vmul.f32 %v416, 1.442695
        %v423 = vpow.pop %v422
        %v424 = vmul.f32 %v417, 1.442695
        %v425 = vpow.pop %v424
        %v426 = vadd.f32 %v419, 1.0
        %v427 = vadd.f32 %v421, 1.0
        %v428 = vadd.f32 %v423, 1.0
        %v429 = vadd.f32 %v425, 1.0
        %v430 = vrcp.pop %v426
        %v431 = vmul.f32 1.0, %v430
        %v432 = vrcp.pop %v427
        %v433 = vmul.f32 1.0, %v432
        %v434 = vrcp.pop %v428
        %v435 = vmul.f32 1.0, %v434
        %v436 = vrcp.pop %v429
        %v437 = vmul.f32 1.0, %v436
        %vm438 = vcmask 7168
        %439 = vst.msk [vmem:[%s266] sm:$0xff] %vm438, %v431
        %440 = vst.msk [vmem:[%s266 + $0x8] sm:$0xff] %vm438, %v433
        %441 = vst.msk [vmem:[%s266 + $0x10] sm:$0xff] %vm438, %v435
        %442 = vst.msk [vmem:[%s266 + $0x18] sm:$0xff] %vm438, %v437
        %v443 = vmul.f32 %v268, %v431
        %v444 = vmul.f32 %v269, %v433
        %v445 = vmul.f32 %v270, %v435
        %v446 = vmul.f32 %v271, %v437
        %447 = vst [vmem:[%s247] sm:$0xff] %v443
        %448 = vst [vmem:[%s247 + $0x8] sm:$0xff] %v444
        %449 = vst [vmem:[%s247 + $0x10] sm:$0xff] %v445
        %450 = vst [vmem:[%s247 + $0x18] sm:$0xff] %v446
        %s451 = sand.u32 %s140, 1
        %s452 = scalar_lea.sflag [#allocation4], %s451
        %s453 = sand.u32 %s140, 1
        %s454 = smul.addr %s453, 32
        %s455 = scalar_lea.vmem [#allocation3], %s454
        %s456 = smul.u32 4, %s22
        %p457 = scmp.lt.s32.totalorder %s456, 7
        %s458 = scalar_select %p457, %s456, 7
        %s459 = smul.addr %s458, 8
        %s460 = scalar_lea.vmem %s6, %s459
        // Predicated region
        $region41: #{tpu_custom_call.1} parent=39 // pred_check
          %p461 = pneg %p150
        $region42: #{tpu_custom_call.1} parent=39 // pred_check_branch
          %463 = sbr.rel (%p461) target = $region44
        $region43: #{tpu_custom_call.1} parent=39 // pred_region
          %s464 = smul.u32 4, %s22
          %s466 = ssub.s32 512, 512
          %467 = vsyncadd %s452, %s466
          %s468 = smul.addr %s464, 128
          %s469 = scalar_lea.hbm %s5, %s468
          %s470 = sshll.u32 %s455, 4
          %s471 = int_to_ptr.vmem [resolvable:$true] %s470
          %476 = dma.vmem_to_hbm [thread:$0]  %s471, 512, %s469, %s452, 128, 128, 8
        $region44: #{tpu_custom_call.1} parent=39 // pred_fallthru
          _
        // Predicated region
        $region45: #{tpu_custom_call.1} parent=39 // pred_check
          %p477 = pneg %p176
        $region46: #{tpu_custom_call.1} parent=39 // pred_check_branch
          %479 = sbr.rel (%p477) target = $region48
        $region47: #{tpu_custom_call.1} parent=39 // pred_region
          %s480 = smul.u32 4, %s22
        $region48: #{tpu_custom_call.1} parent=39 // pred_fallthru
          _
      $region40: #{tpu_custom_call.1} parent=5 // pred_fallthru
        _
      %p481 = scmp.le.s32.totalorder 2, %s17
      // Predicated region
      $region49: #{tpu_custom_call.1} parent=5 // pred_check
        %p482 = pneg %p481
      $region50: #{tpu_custom_call.1} parent=5 // pred_check_branch
        %484 = sbr.rel (%p482) target = $region52
      $region51: #{tpu_custom_call.1} parent=5 // pred_region
        %s485 = ssub.s32 %s17, 2
        // Predicated region
        $region53: #{tpu_custom_call.1} parent=51 // pred_check
          %p486 = pneg %p156
        $region54: #{tpu_custom_call.1} parent=51 // pred_check_branch
          %488 = sbr.rel (%p486) target = $region56
        $region55: #{tpu_custom_call.1} parent=51 // pred_region
          %s489 = sand.u32 %s141, 1
          %s490 = scalar_lea.sflag [#allocation4], %s489
          %s491 = sand.u32 %s141, 1
          %s492 = smul.addr %s491, 32
          %s493 = scalar_lea.vmem [#allocation3], %s492
          %494 = dma.done %s490, 512
        $region56: #{tpu_custom_call.1} parent=51 // pred_fallthru
          _
        // Predicated region
        $region57: #{tpu_custom_call.1} parent=51 // pred_check
          %p495 = pneg %p182
        $region58: #{tpu_custom_call.1} parent=51 // pred_check_branch
          %497 = sbr.rel (%p495) target = $region60
        $region59: #{tpu_custom_call.1} parent=51 // pred_region
          %s498 = smul.u32 4, %s23
          %p499 = scmp.lt.s32.totalorder %s498, 7
          %s500 = scalar_select %p499, %s498, 7
          %s501 = smul.addr %s500, 8
          %s502 = scalar_lea.vmem %s6, %s501
        $region60: #{tpu_custom_call.1} parent=51 // pred_fallthru
          _
      $region52: #{tpu_custom_call.1} parent=5 // pred_fallthru
        _
    $region6: #{tpu_custom_call.1} parent=1 // loop_footer
      %s21 = sadd.s32 1, %s17
    $region7: #{tpu_custom_call.1} parent=1 // loop_footer_branch
      %16 = sbr.rel target = $region3
    $region8: #{tpu_custom_call.1} parent=1 // loop_exit
      _
    %503 = vsyncpa [#allocation4], 1
    %s504 = scalar_lea.sflag [#allocation4], 1
    %505 = vsyncpa %s504, 1

</llo_original>
